<compile_context>
chip_gen: v7x
topology: tpu7x:2x2x1
jax: 0.10.0
libtpu: 0.0.40
codegen_flags: <defaults>
</compile_context>

<pallas_src>
import jax
import jax.numpy as jnp
from jax.experimental import pallas as pl
from jax.experimental.pallas import tpu as pltpu

_LANE = 128       # vreg lane width (last-dim tiling unit)
_SUBLANE = 8      # vreg sublane count (second-to-last tiling unit)
_TN_MAX = 2048    # lane-dim tile cap (multiple of 128)
_TB_MAX = 256     # batch-dim tile cap (multiple of 8)


def _drop_path_kernel(x_ref, scale_ref, o_ref):
    # x_ref:     (TB, TN) input tile
    # scale_ref: (TB, 1)  float32 per-sample scale (0 or 1/keep_prob)
    # Multiply in f32, cast only the final product (matches reference math).
    o_ref[...] = (x_ref[...].astype(jnp.float32) * scale_ref[...]).astype(o_ref.dtype)


def drop_path(x, drop_prob: float = 0.0, training: bool = False, *, key=None):
    """Pallas DropPath. x: (B, ...) any trailing dims; returns same shape/dtype."""
    if drop_prob == 0.0 or not training:
        return x
    assert key is not None, "need a PRNG key when training with drop_prob > 0"
    keep_prob = 1.0 - float(drop_prob)

    b = x.shape[0]
    x2 = x.reshape(b, -1)
    n = x2.shape[1]

    # Per-sample uniform randoms and scale, computed in float32 regardless of
    # x dtype (avoids bf16 rounding of the drop threshold / rescale factor).
    rand = jax.random.uniform(key, (b, 1), dtype=jnp.float32)
    scale = jnp.floor(keep_prob + rand) * jnp.float32(1.0 / keep_prob)  # (B, 1) f32

    # Pad N up to a multiple of 128 so every output block is lane-dense.
    n_pad = (-n) % _LANE
    if n_pad:
        x2 = jnp.pad(x2, ((0, 0), (0, n_pad)))
    n_p = n + n_pad

    # Tile sizes: full extent when small (always legal), otherwise capped at
    # multiples of (8, 128). ~2 MiB f32 tiles keep the double-buffered
    # footprint under the v5e 16 MiB scoped-VMEM default on all generations.
    tn = n_p if n_p <= _TN_MAX else _TN_MAX
    tb = b if b <= _TB_MAX else _TB_MAX

    grid = (pl.cdiv(b, tb), pl.cdiv(n_p, tn))

    out = pl.pallas_call(
        _drop_path_kernel,
        out_shape=jax.ShapeDtypeStruct((b, n_p), x2.dtype),
        grid=grid,
        in_specs=[
            pl.BlockSpec((tb, tn), lambda i, j: (i, j)),
            pl.BlockSpec((tb, 1), lambda i, j: (i, 0)),
        ],
        out_specs=pl.BlockSpec((tb, tn), lambda i, j: (i, j)),
        compiler_params=pltpu.CompilerParams(
            dimension_semantics=("parallel", "parallel")),
        input_output_aliases={0: 0},
    )(x2, scale)

    if n_pad:
        out = out[:, :n]
    return out.reshape(x.shape)


class DropPath:
    """Drop paths (Stochastic Depth) per sample — Pallas version."""

    def __init__(self, drop_prob=None):
        self.drop_prob = 0.0 if drop_prob is None else float(drop_prob)
        self.training = True

    def __call__(self, x, *, key=None):
        return drop_path(x, self.drop_prob, self.training, key=key)


if __name__ == "__main__":
    key = jax.random.PRNGKey(0)
    kx, kmask, kx2, kmask2 = jax.random.split(key, 4)

    # Small NCHW input consistent with the module's usage inside a ViT block.
    B, C, H, W = 2, 4, 16, 16
    x = jax.random.normal(kx, (B, C, H, W), dtype=jnp.float32)

    # Training path (drop_prob > 0): kernel runs.
    module = DropPath(drop_prob=0.25)
    module.training = True
    y = jax.block_until_ready(module(x, key=kmask))
    assert y.shape == x.shape and y.dtype == x.dtype

    # Reference check: per-sample scale is either 0 or 1/keep_prob.
    keep_prob = 1.0 - module.drop_prob
    rand = jax.random.uniform(kmask, (B, 1), dtype=jnp.float32)
    mask = jnp.floor(keep_prob + rand).reshape(B, 1, 1, 1)
    y_ref = x / keep_prob * mask
    assert jnp.allclose(y, y_ref, atol=1e-6, rtol=1e-6)

    # Second check: bf16 input with N not a multiple of 128 (exercises the
    # lane-padding path and f32 mask math).
    B2, C2, H2, W2 = 8, 3, 20, 20
    xb = jax.random.normal(kx2, (B2, C2, H2, W2), dtype=jnp.bfloat16)
    yb = jax.block_until_ready(drop_path(xb, 0.1, True, key=kmask2))
    assert yb.shape == xb.shape and yb.dtype == xb.dtype
    kp2 = 1.0 - 0.1
    rand2 = jax.random.uniform(kmask2, (B2, 1), dtype=jnp.float32)
    scale2 = jnp.floor(kp2 + rand2) * jnp.float32(1.0 / kp2)
    yb_ref = (xb.astype(jnp.float32).reshape(B2, -1) * scale2).astype(
        jnp.bfloat16).reshape(xb.shape)
    assert jnp.allclose(yb.astype(jnp.float32), yb_ref.astype(jnp.float32),
                        atol=1e-2, rtol=1e-2)

    # Eval path: identity.
    module.training = False
    y_eval = jax.block_until_ready(module(x))
    assert jnp.array_equal(y_eval, x)

    print("KERNEL_OK")
</pallas_src>

<mosaic_0001>
module attributes {stable_mosaic.version = 11 : i64} {
  func.func @_drop_path_kernel(%arg0: i32, %arg1: i32, %arg2: memref<2x1024xf32, #tpu.memory_space<vmem>>, %arg3: memref<2x1xf32, #tpu.memory_space<vmem>>, %arg4: memref<2x1024xf32, #tpu.memory_space<vmem>>) attributes {dimension_semantics = [#tpu.dimension_semantics<parallel>, #tpu.dimension_semantics<parallel>], iteration_bounds = array<i64: 1, 1>, scalar_prefetch = 0 : i64, scratch_operands = 0 : i64, tpu.core_type = #tpu.core_type<tc>, window_params = [{transform_indices = @transform_0, window_bounds = array<i64: 2, 1024>}, {transform_indices = @transform_1, window_bounds = array<i64: 2, 1>}, {transform_indices = @transform_2, window_bounds = array<i64: 2, 1024>}]} {
    %c0 = arith.constant 0 : index
    %c0_0 = arith.constant 0 : index
    %0 = vector.load %arg2[%c0, %c0_0] : memref<2x1024xf32, #tpu.memory_space<vmem>>, vector<2x1024xf32>
    %c0_1 = arith.constant 0 : index
    %c0_2 = arith.constant 0 : index
    %1 = vector.load %arg3[%c0_1, %c0_2] : memref<2x1xf32, #tpu.memory_space<vmem>>, vector<2x1xf32>
    %2 = vector.broadcast %1 : vector<2x1xf32> to vector<2x1024xf32>
    %3 = arith.mulf %0, %2 : vector<2x1024xf32>
    %c0_3 = arith.constant 0 : index
    %c0_4 = arith.constant 0 : index
    %4 = vector.load %arg4[%c0_3, %c0_4] : memref<2x1024xf32, #tpu.memory_space<vmem>>, vector<2x1024xf32>
    tpu.vector_store %arg4[%c0_3, %c0_4], %3 {strides = array<i32>} : memref<2x1024xf32, #tpu.memory_space<vmem>>, vector<2x1024xf32>,
    return
  }
  func.func @transform_0(%arg0: i32, %arg1: i32) -> (i32, i32) {
    %c0_i32 = arith.constant 0 : i32
    return %arg0, %arg1 : i32, i32
  }
  func.func @transform_1(%arg0: i32, %arg1: i32) -> (i32, i32) {
    %c0_i32 = arith.constant 0 : i32
    %c0_i32_0 = arith.constant 0 : i32
    return %arg0, %c0_i32 : i32, i32
  }
  func.func @transform_2(%arg0: i32, %arg1: i32) -> (i32, i32) {
    %c0_i32 = arith.constant 0 : i32
    return %arg0, %arg1 : i32, i32
  }
}

</mosaic_0001>

<llo_original>
// kernel: tpu_custom_call.1
$region0: #{tpu_custom_call.1}
  #allocation0 [shape = 'u32[]', space=smem, size = 0x4, offset = 0x4, fixed_abs, tag = 'smem constant byte address 0x4 - core index']
  #allocation1 [shape = 'u32[144,128]{1,0:T(1,128)}', space=vmem, size = 0x12000, scoped, tag = 'internal scratch']
  %s0 = inlined_call_operand.hbm [shape: f32[2,1024], index: 0, kind: input, shape index: {}, may-alias: {0,2}]
  %s1 = inlined_call_operand.vmem [shape: f32[2,1], index: 1, kind: input, shape index: {}]
  %s2 = inlined_call_operand.hbm [shape: f32[2,1024], index: 2, kind: output, shape index: {}, may-alias: {0,2}]
  %s3 = sld [smem:[#allocation0]]
  $region22: #{tpu_custom_call.1} parent=0
    _
  %s5 = ssub.s32 1, %s3
  %s6 = scalar_select 0, %s5, %s3
  $region1: #{tpu_custom_call.1} parent=0
    #allocation2 [shape = 'u8[8192]{0}', space=vmem, size = 0x2000, scoped, tag = 'input window, operand 0, single buffered']
    #allocation3 [shape = 's32[1]{0}', space=sflag, size = 0x4, scoped, tag = 'scoped memory for tpu_custom_call.1']
    #allocation4 [shape = 's32[1]{0}', space=sflag, size = 0x4, scoped, tag = 'scoped memory for tpu_custom_call.1']
    #allocation5 [shape = 'u8[8192]{0}', space=vmem, size = 0x2000, scoped, tag = 'output window, operand 0, single buffered']
    %7 = vsyncpa [#allocation3], 0
    %8 = vsyncpa [#allocation4], 0
    // Predicated region
    $region2: #{tpu_custom_call.1} parent=1 // pred_check
      _
    $region3: #{tpu_custom_call.1} parent=1 // pred_check_branch
      %10 = sbr.rel (0) target = $region5
    $region4: #{tpu_custom_call.1} parent=1 // pred_region
      %s12 = ssub.s32 256, 256
      %13 = vsyncadd [#allocation3], %s12
      %s15 = sshll.u32 [#allocation2], 4
      %s16 = int_to_ptr.vmem [resolvable:$true] %s15
      %18 = dma.hbm_to_vmem [thread:$0]  %s0, 256, %s16, [#allocation3]
    $region5: #{tpu_custom_call.1} parent=1 // pred_fallthru
      _
    // Predicated region
    $region6: #{tpu_custom_call.1} parent=1 // pred_check
      _
    $region7: #{tpu_custom_call.1} parent=1 // pred_check_branch
      %20 = sbr.rel (0) target = $region9
    $region8: #{tpu_custom_call.1} parent=1 // pred_region
      _
    $region9: #{tpu_custom_call.1} parent=1 // pred_fallthru
      _
    // Predicated region
    $region10: #{tpu_custom_call.1} parent=1 // pred_check
      _
    $region11: #{tpu_custom_call.1} parent=1 // pred_check_branch
      %22 = sbr.rel (0) target = $region13
    $region12: #{tpu_custom_call.1} parent=1 // pred_region
      %23 = dma.done [#allocation3], 256
    $region13: #{tpu_custom_call.1} parent=1 // pred_fallthru
      _
    %v24 = vld [vmem:[#allocation2] sm:$0xff]
    %v25 = vld [vmem:[#allocation2 + $0x8] sm:$0xff]
    %v26 = vld [vmem:[%s1] sm:$0x3]
    %28 = vset.pattern.permute.xlu0 0
    %29 = vperm.xlu0 %28, %v26
    %v30 = vpop.permute.xlu0 %29
    %v32 = vunpack.c.l.s4 269488144
    %v33 = vunpack.c.0.s8 %v32
    %v34 = vlaneseq
    %v35 = vshrl.u32 %v34, 7
    %v36 = vsub.s32 %v33, %v35
    %v37 = vrot.slane %v30, %v36
    %v39 = vmul.f32 %v24, %v37
    %v40 = vmul.f32 %v25, %v37
    %41 = vst [vmem:[#allocation5] sm:$0xff] %v39
    %42 = vst [vmem:[#allocation5 + $0x8] sm:$0xff] %v40
    // Predicated region
    $region14: #{tpu_custom_call.1} parent=1 // pred_check
      _
    $region15: #{tpu_custom_call.1} parent=1 // pred_check_branch
      %44 = sbr.rel (0) target = $region17
    $region16: #{tpu_custom_call.1} parent=1 // pred_region
      %s46 = ssub.s32 256, 256
      %47 = vsyncadd [#allocation4], %s46
      %s49 = sshll.u32 [#allocation5], 4
      %s50 = int_to_ptr.vmem [resolvable:$true] %s49
      %52 = dma.vmem_to_hbm [thread:$0]  %s50, 256, %s2, [#allocation4]
    $region17: #{tpu_custom_call.1} parent=1 // pred_fallthru
      _
    // Predicated region
    $region18: #{tpu_custom_call.1} parent=1 // pred_check
      _
    $region19: #{tpu_custom_call.1} parent=1 // pred_check_branch
      %54 = sbr.rel (0) target = $region21
    $region20: #{tpu_custom_call.1} parent=1 // pred_region
      %55 = dma.done [#allocation4], 256
    $region21: #{tpu_custom_call.1} parent=1 // pred_fallthru
      _
    %56 = vsyncpa [#allocation3], 1
    %57 = vsyncpa [#allocation4], 1

</llo_original>
